<compile_context>
chip_gen: v5e
topology: v5e:2x2
jax: 0.10.0
libtpu: 0.0.40
codegen_flags: <defaults>
</compile_context>

<pallas_src>
import jax
import jax.numpy as jnp
from jax.experimental import pallas as pl
from jax.experimental.pallas import tpu as pltpu

DIM = 32            # config.dim
HIDDEN = 64         # config.intermediate_size
EPS = 1e-8          # config.norm_eps
PACK = 4            # tokens packed per 128-lane row (PACK * DIM == 128)
TM_TOKENS = 8192    # tokens per grid step (sweep 4K-16K per generation)


def _round_up(v, m):
    return (v + m - 1) // m * m


def _block_diag4(w):
    """(din, dout) -> (PACK*din, PACK*dout) block-diagonal replication."""
    din, dout = w.shape
    out = jnp.zeros((PACK * din, PACK * dout), w.dtype)
    for t in range(PACK):
        out = out.at[t * din:(t + 1) * din, t * dout:(t + 1) * dout].set(w)
    return out


def pack_params(params, stream_dtype):
    """Build the lane-dense packed weights (do once per model in production)."""
    w1, b1, w2, b2, g, wo, bo = params
    # Fused ff1 || ff2, block-diagonal over the 4 packed tokens: (128, 512).
    w12_bd = jnp.concatenate([_block_diag4(w1), _block_diag4(w2)], axis=1)
    b12_p = jnp.concatenate([jnp.tile(b1, (1, PACK)), jnp.tile(b2, (1, PACK))],
                            axis=1)                       # (1, 512)
    # Fold RMSNorm gain into wo BEFORE any bf16 cast (exact in f32).
    wo_g = g.reshape(HIDDEN, 1) * wo                      # (64, 32)
    wog_bd = _block_diag4(wo_g)                           # (256, 128)
    bo_p = jnp.tile(bo, (1, PACK))                        # (1, 128)
    # Segmented mean-of-squares matrix: ms for token t broadcast to its 32 lanes.
    rg = jnp.arange(PACK * HIDDEN) // HIDDEN              # (256,)
    cg = jnp.arange(PACK * DIM) // DIM                    # (128,)
    m_mat = (rg[:, None] == cg[None, :]).astype(jnp.float32) / HIDDEN  # (256, 128)
    return (w12_bd.astype(stream_dtype), b12_p.astype(jnp.float32),
            m_mat, wog_bd.astype(stream_dtype), bo_p.astype(jnp.float32))


def ffn_kernel(xp_ref, w12_ref, b12_ref, m_ref, wog_ref, bo_ref, o_ref):
    # xp tile: (TMP, 128) = 4 tokens per row, streamed dtype (bf16/f32).
    xp = xp_ref[...]

    # Fused ff1 || ff2: (TMP, 128) @ (128, 512) -> f32 accumulate on the MXU.
    h12 = jnp.dot(xp, w12_ref[...],
                  preferred_element_type=jnp.float32) + b12_ref[...]
    h1 = h12[:, :PACK * HIDDEN]          # vreg-aligned lane slice (lanes 0..255)
    h2 = h12[:, PACK * HIDDEN:]          # lanes 256..511

    # SiLU(ff1) * ff2, all in f32 (v5e has no bf16 VPU/EUP).
    h = (h1 * jax.nn.sigmoid(h1)) * h2   # (TMP, 256)

    # Per-token mean of squares via a segmented-sum matmul (f32, MXU has slack).
    ms = jnp.dot(h * h, m_ref[...], preferred_element_type=jnp.float32)  # (TMP,128)

    # ffo with the RMSNorm gain already folded in; the per-token rsqrt scale is
    # applied after the matmul (exact reordering in f32).
    out = jnp.dot(h.astype(wog_ref.dtype), wog_ref[...],
                  preferred_element_type=jnp.float32)
    out = out * jax.lax.rsqrt(ms + EPS) + bo_ref[...]

    # TODO(synk): dropout is only active in training mode (p>0); skipped (eval).
    o_ref[...] = out.astype(o_ref.dtype)


def feedforward(x, params, *, stream_dtype=jnp.bfloat16, tm_tokens=TM_TOKENS):
    """x: (B, S, DIM) -> (B, S, DIM) in `stream_dtype`."""
    B, S, D = x.shape
    assert D == DIM
    N = B * S
    x2 = x.reshape(N, D)

    # Pad only to a multiple of PACK (<=3 rows, negligible); the large token
    # tile is handled by Pallas's masked partial final block, not jnp.pad.
    pad = (-N) % PACK
    if pad:
        x2 = jnp.pad(x2, ((0, pad), (0, 0)))
    n_rows = (N + pad) // PACK
    xp = x2.reshape(n_rows, PACK * DIM).astype(stream_dtype)   # free reshape

    w12_bd, b12_p, m_mat, wog_bd, bo_p = pack_params(params, stream_dtype)

    # Packed-row tile: large enough to amortize the ~0.35us step overhead, but
    # shrink for tiny inputs. Multiple of 16 (bf16 sublane tiling).
    tmp = max(16, min(tm_tokens // PACK, _round_up(n_rows, 16)))
    grid = (pl.cdiv(n_rows, tmp),)

    rep = lambda i: (0, 0)   # weights resident across the whole grid

    out_p = pl.pallas_call(
        ffn_kernel,
        out_shape=jax.ShapeDtypeStruct((n_rows, PACK * DIM), stream_dtype),
        grid_spec=pltpu.PrefetchScalarGridSpec(
            num_scalar_prefetch=0,
            grid=grid,
            in_specs=[
                pl.BlockSpec((tmp, PACK * DIM), lambda i: (i, 0)),       # packed x
                pl.BlockSpec((PACK * DIM, 2 * PACK * HIDDEN), rep),      # w1||w2 block-diag
                pl.BlockSpec((1, 2 * PACK * HIDDEN), rep),               # b1||b2 tiled
                pl.BlockSpec((PACK * HIDDEN, PACK * DIM), rep),          # mean matrix
                pl.BlockSpec((PACK * HIDDEN, PACK * DIM), rep),          # g-folded wo block-diag
                pl.BlockSpec((1, PACK * DIM), rep),                      # bo tiled
            ],
            out_specs=pl.BlockSpec((tmp, PACK * DIM), lambda i: (i, 0)),
        ),
        compiler_params=pltpu.CompilerParams(
            dimension_semantics=("parallel",),
            # headroom for f32 intermediates, still under v7x's 64 MiB physical
            vmem_limit_bytes=48 * 1024 * 1024,
        ),
        # TODO(synk): add pipeline_mode=pl.Buffered(3) on the x/out specs only if
        # an xprof trace shows exposed DMA at this tile size (most likely on v7x).
    )(xp, w12_bd, b12_p, m_mat, wog_bd, bo_p)

    out2 = out_p.reshape(n_rows * PACK, DIM)[:N]
    return out2.reshape(B, S, DIM)


def init_params(key):
    """Deterministic parameter init. Linear weights stored as (in, out)."""
    ks = jax.random.split(key, 6)
    s1 = 1.0 / jnp.sqrt(DIM)
    s2 = 1.0 / jnp.sqrt(HIDDEN)
    w1 = jax.random.uniform(ks[0], (DIM, HIDDEN), jnp.float32, -s1, s1)
    b1 = jax.random.uniform(ks[1], (1, HIDDEN), jnp.float32, -s1, s1)
    w2 = jax.random.uniform(ks[2], (DIM, HIDDEN), jnp.float32, -s1, s1)
    b2 = jax.random.uniform(ks[3], (1, HIDDEN), jnp.float32, -s1, s1)
    g = jnp.ones((1, HIDDEN), jnp.float32)                 # RMSNorm weight
    wo = jax.random.uniform(ks[4], (HIDDEN, DIM), jnp.float32, -s2, s2)
    bo = jax.random.uniform(ks[5], (1, DIM), jnp.float32, -s2, s2)
    return (w1, b1, w2, b2, g, wo, bo)


def feedforward_ref(x, params):
    """Pure-JAX f32 reference mirroring the PyTorch forward."""
    w1, b1, w2, b2, g, wo, bo = params
    h1 = jnp.dot(x, w1, precision="highest") + b1
    swish = h1 * jax.nn.sigmoid(h1)
    h = swish * (jnp.dot(x, w2, precision="highest") + b2)
    ms = jnp.mean(jnp.square(h), axis=-1, keepdims=True)
    h = g * (h * jax.lax.rsqrt(ms + EPS))
    return jnp.dot(h, wo, precision="highest") + bo


if __name__ == "__main__":
    key = jax.random.PRNGKey(0)
    pkey, xkey = jax.random.split(key)
    params = init_params(pkey)

    B, S = 2, 8
    x = jax.random.normal(xkey, (B, S, DIM), dtype=jnp.float32)
    ref = feedforward_ref(x, params)

    # 1) f32 streaming: validates the packed block-diagonal algebra tightly.
    out_f32 = feedforward(x, params, stream_dtype=jnp.float32)
    jax.block_until_ready(out_f32)
    assert out_f32.shape == (B, S, DIM)
    err_f32 = float(jnp.max(jnp.abs(out_f32.astype(jnp.float32) - ref)))
    assert jnp.allclose(out_f32.astype(jnp.float32), ref,
                        atol=1e-4, rtol=1e-4), err_f32

    # 2) Default bf16 streaming (production config): looser tolerance vs f32 ref.
    out_bf16 = feedforward(x, params)
    jax.block_until_ready(out_bf16)
    assert out_bf16.shape == (B, S, DIM)
    err_bf16 = float(jnp.max(jnp.abs(out_bf16.astype(jnp.float32) - ref)))
    assert jnp.allclose(out_bf16.astype(jnp.float32), ref,
                        atol=5e-2, rtol=5e-2), err_bf16

    print("KERNEL_OK")
</pallas_src>

<mosaic_0001>
module attributes {stable_mosaic.version = 11 : i64} {
  func.func @ffn_kernel(%arg0: i32, %arg1: memref<16x128xf32, #tpu.memory_space<vmem>>, %arg2: memref<128x512xf32, #tpu.memory_space<vmem>>, %arg3: memref<1x512xf32, #tpu.memory_space<vmem>>, %arg4: memref<256x128xf32, #tpu.memory_space<vmem>>, %arg5: memref<256x128xf32, #tpu.memory_space<vmem>>, %arg6: memref<1x128xf32, #tpu.memory_space<vmem>>, %arg7: memref<16x128xf32, #tpu.memory_space<vmem>>) attributes {dimension_semantics = [#tpu.dimension_semantics<parallel>], iteration_bounds = array<i64: 1>, scalar_prefetch = 0 : i64, scratch_operands = 0 : i64, tpu.core_type = #tpu.core_type<tc>, window_params = [{transform_indices = @transform_0, window_bounds = array<i64: 16, 128>}, {pipeline_mode = #tpu.pipeline_mode<synchronous>, transform_indices = @transform_1, window_bounds = array<i64: 128, 512>}, {pipeline_mode = #tpu.pipeline_mode<synchronous>, transform_indices = @transform_2, window_bounds = array<i64: 1, 512>}, {pipeline_mode = #tpu.pipeline_mode<synchronous>, transform_indices = @transform_3, window_bounds = array<i64: 256, 128>}, {pipeline_mode = #tpu.pipeline_mode<synchronous>, transform_indices = @transform_4, window_bounds = array<i64: 256, 128>}, {pipeline_mode = #tpu.pipeline_mode<synchronous>, transform_indices = @transform_5, window_bounds = array<i64: 1, 128>}, {transform_indices = @transform_6, window_bounds = array<i64: 16, 128>}]} {
    %c0 = arith.constant 0 : index
    %c0_0 = arith.constant 0 : index
    %0 = vector.load %arg1[%c0, %c0_0] : memref<16x128xf32, #tpu.memory_space<vmem>>, vector<16x128xf32>
    %c0_1 = arith.constant 0 : index
    %c0_2 = arith.constant 0 : index
    %1 = vector.load %arg2[%c0_1, %c0_2] : memref<128x512xf32, #tpu.memory_space<vmem>>, vector<128x512xf32>
    %cst = arith.constant dense<0.000000e+00> : vector<16x512xf32>
    %2 = tpu.matmul %0, %1, %cst {dimension_numbers = #tpu.dot_dimension_numbers<[1], [0], [0], [1], [0, 0, 1, 1], [], []>} : vector<16x128xf32>, vector<128x512xf32>, vector<16x512xf32> -> vector<16x512xf32>
    %c0_3 = arith.constant 0 : index
    %c0_4 = arith.constant 0 : index
    %3 = vector.load %arg3[%c0_3, %c0_4] : memref<1x512xf32, #tpu.memory_space<vmem>>, vector<1x512xf32>
    %4 = vector.broadcast %3 : vector<1x512xf32> to vector<16x512xf32>
    %5 = arith.addf %2, %4 : vector<16x512xf32>
    %6 = vector.extract_strided_slice %5 {offsets = [0, 0], sizes = [16, 256], strides = [1, 1]} : vector<16x512xf32> to vector<16x256xf32>
    %7 = vector.extract_strided_slice %5 {offsets = [0, 256], sizes = [16, 256], strides = [1, 1]} : vector<16x512xf32> to vector<16x256xf32>
    %8 = arith.negf %6 : vector<16x256xf32>
    %9 = math.exp %8 : vector<16x256xf32>
    %cst_5 = arith.constant 1.000000e+00 : f32
    %10 = vector.broadcast %cst_5 : f32 to vector<16x256xf32>
    %11 = arith.addf %10, %9 : vector<16x256xf32>
    %12 = arith.divf %10, %11 : vector<16x256xf32>
    %13 = arith.mulf %6, %12 : vector<16x256xf32>
    %14 = arith.mulf %13, %7 : vector<16x256xf32>
    %15 = arith.mulf %14, %14 : vector<16x256xf32>
    %c0_6 = arith.constant 0 : index
    %c0_7 = arith.constant 0 : index
    %16 = vector.load %arg4[%c0_6, %c0_7] : memref<256x128xf32, #tpu.memory_space<vmem>>, vector<256x128xf32>
    %cst_8 = arith.constant dense<0.000000e+00> : vector<16x128xf32>
    %17 = tpu.matmul %15, %16, %cst_8 {dimension_numbers = #tpu.dot_dimension_numbers<[1], [0], [0], [1], [0, 0, 1, 1], [], []>} : vector<16x256xf32>, vector<256x128xf32>, vector<16x128xf32> -> vector<16x128xf32>
    %c0_9 = arith.constant 0 : index
    %c0_10 = arith.constant 0 : index
    %18 = vector.load %arg5[%c0_9, %c0_10] : memref<256x128xf32, #tpu.memory_space<vmem>>, vector<256x128xf32>
    %cst_11 = arith.constant dense<0.000000e+00> : vector<16x128xf32>
    %19 = tpu.matmul %14, %18, %cst_11 {dimension_numbers = #tpu.dot_dimension_numbers<[1], [0], [0], [1], [0, 0, 1, 1], [], []>} : vector<16x256xf32>, vector<256x128xf32>, vector<16x128xf32> -> vector<16x128xf32>
    %cst_12 = arith.constant 9.99999993E-9 : f32
    %20 = vector.broadcast %cst_12 : f32 to vector<16x128xf32>
    %21 = arith.addf %17, %20 : vector<16x128xf32>
    %22 = math.rsqrt %21 : vector<16x128xf32>
    %23 = arith.mulf %19, %22 : vector<16x128xf32>
    %c0_13 = arith.constant 0 : index
    %c0_14 = arith.constant 0 : index
    %24 = vector.load %arg6[%c0_13, %c0_14] : memref<1x128xf32, #tpu.memory_space<vmem>>, vector<1x128xf32>
    %25 = vector.broadcast %24 : vector<1x128xf32> to vector<16x128xf32>
    %26 = arith.addf %23, %25 : vector<16x128xf32>
    %c0_15 = arith.constant 0 : index
    %c0_16 = arith.constant 0 : index
    %27 = vector.load %arg7[%c0_15, %c0_16] : memref<16x128xf32, #tpu.memory_space<vmem>>, vector<16x128xf32>
    tpu.vector_store %arg7[%c0_15, %c0_16], %26 {strides = array<i32>} : memref<16x128xf32, #tpu.memory_space<vmem>>, vector<16x128xf32>,
    return
  }
  func.func @transform_0(%arg0: i32) -> (i32, i32) {
    %c0_i32 = arith.constant 0 : i32
    %c0_i32_0 = arith.constant 0 : i32
    return %arg0, %c0_i32 : i32, i32
  }
  func.func @transform_1(%arg0: i32) -> (i32, i32) {
    %c0_i32 = arith.constant 0 : i32
    %c0_i32_0 = arith.constant 0 : i32
    %c0_i32_1 = arith.constant 0 : i32
    return %c0_i32, %c0_i32_0 : i32, i32
  }
  func.func @transform_2(%arg0: i32) -> (i32, i32) {
    %c0_i32 = arith.constant 0 : i32
    %c0_i32_0 = arith.constant 0 : i32
    %c0_i32_1 = arith.constant 0 : i32
    return %c0_i32, %c0_i32_0 : i32, i32
  }
  func.func @transform_3(%arg0: i32) -> (i32, i32) {
    %c0_i32 = arith.constant 0 : i32
    %c0_i32_0 = arith.constant 0 : i32
    %c0_i32_1 = arith.constant 0 : i32
    return %c0_i32, %c0_i32_0 : i32, i32
  }
  func.func @transform_4(%arg0: i32) -> (i32, i32) {
    %c0_i32 = arith.constant 0 : i32
    %c0_i32_0 = arith.constant 0 : i32
    %c0_i32_1 = arith.constant 0 : i32
    return %c0_i32, %c0_i32_0 : i32, i32
  }
  func.func @transform_5(%arg0: i32) -> (i32, i32) {
    %c0_i32 = arith.constant 0 : i32
    %c0_i32_0 = arith.constant 0 : i32
    %c0_i32_1 = arith.constant 0 : i32
    return %c0_i32, %c0_i32_0 : i32, i32
  }
  func.func @transform_6(%arg0: i32) -> (i32, i32) {
    %c0_i32 = arith.constant 0 : i32
    %c0_i32_0 = arith.constant 0 : i32
    return %arg0, %c0_i32 : i32, i32
  }
}

</mosaic_0001>

<llo_original>
// kernel: tpu_custom_call.1
$region0: #{tpu_custom_call.1}
  #allocation0 [shape = 'u32[]', space=smem, size = 0x4, offset = 0x4, fixed_abs, tag = 'smem constant byte address 0x4 - core index']
  #allocation1 [shape = 'u32[72,128]{1,0:T(1,128)}', space=vmem, size = 0x9000, scoped, tag = 'internal scratch']
  %s0 = inlined_call_operand.hbm [shape: f32[4,128], index: 0, kind: input, shape index: {}]
  %s1 = inlined_call_operand.hbm [shape: f32[128,512], index: 1, kind: input, shape index: {}]
  %s2 = inlined_call_operand.hbm [shape: f32[1,512], index: 2, kind: input, shape index: {}]
  %s3 = inlined_call_operand.hbm [shape: f32[256,128], index: 3, kind: input, shape index: {}]
  %s4 = inlined_call_operand.hbm [shape: f32[256,128], index: 4, kind: input, shape index: {}]
  %s5 = inlined_call_operand.vmem [shape: f32[1,128], index: 5, kind: input, shape index: {}]
  %s6 = inlined_call_operand.hbm [shape: f32[4,128], index: 6, kind: output, shape index: {}]
  %s7 = sld [smem:[#allocation0]]
  $region54: #{tpu_custom_call.1} parent=0
    _
  %s9 = ssub.s32 1, %s7
  %s10 = scalar_select 0, %s9, %s7
  $region1: #{tpu_custom_call.1} parent=0
    #allocation2 [shape = 'u8[8192]{0}', space=vmem, size = 0x2000, scoped, tag = 'input window, operand 0, single buffered']
    #allocation3 [shape = 's32[1]{0}', space=sflag, size = 0x4, scoped, tag = 'scoped memory for tpu_custom_call.1']
    #allocation4 [shape = 's32[1]{0}', space=sflag, size = 0x4, scoped, tag = 'scoped memory for tpu_custom_call.1']
    #allocation5 [shape = 'u8[262144]{0}', space=vmem, size = 0x40000, scoped, tag = 'input window, operand 1, single buffered']
    #allocation6 [shape = 's32[1]{0}', space=sflag, size = 0x4, scoped, tag = 'scoped memory for tpu_custom_call.1']
    #allocation7 [shape = 'u8[2048]{0}', space=vmem, size = 0x800, scoped, tag = 'input window, operand 2, single buffered']
    #allocation8 [shape = 'u8[131072]{0}', space=vmem, size = 0x20000, scoped, tag = 'input window, operand 3, single buffered']
    #allocation9 [shape = 's32[1]{0}', space=sflag, size = 0x4, scoped, tag = 'scoped memory for tpu_custom_call.1']
    #allocation10 [shape = 'u8[131072]{0}', space=vmem, size = 0x20000, scoped, tag = 'input window, operand 4, single buffered']
    #allocation11 [shape = 'u8[8192]{0}', space=vmem, size = 0x2000, scoped, tag = 'output window, operand 0, single buffered']
    %11 = vsyncpa [#allocation3], 0
    %12 = vsyncpa [#allocation6], 0
    %13 = vsyncpa [#allocation9], 0
    %14 = vsyncpa [#allocation4], 0
    // Predicated region
    $region2: #{tpu_custom_call.1} parent=1 // pred_check
      _
    $region3: #{tpu_custom_call.1} parent=1 // pred_check_branch
      %16 = sbr.rel (0) target = $region5
    $region4: #{tpu_custom_call.1} parent=1 // pred_region
      %18 = vsyncadd [#allocation3], 192
      %s19 = sshll.u32 %s0, 4
      %s20 = int_to_ptr.hbm [resolvable:$true] %s19
      %s21 = sshll.u32 [#allocation2], 4
      %s22 = int_to_ptr.vmem [resolvable:$true] %s21
      %27 = dma.hbm_to_vmem [thread:$0]  %s20, 64, %s22, [#allocation3], 64, 64, 4
    $region5: #{tpu_custom_call.1} parent=1 // pred_fallthru
      _
    // Predicated region
    $region6: #{tpu_custom_call.1} parent=1 // pred_check
      _
    $region7: #{tpu_custom_call.1} parent=1 // pred_check_branch
      %29 = sbr.rel (0) target = $region9
    $region8: #{tpu_custom_call.1} parent=1 // pred_region
      %31 = vsyncadd [#allocation6], 0
      %s32 = sshll.u32 %s1, 4
      %s33 = int_to_ptr.hbm [resolvable:$true] %s32
      %s34 = sshll.u32 [#allocation5], 4
      %s35 = int_to_ptr.vmem [resolvable:$true] %s34
      %40 = dma.hbm_to_vmem [thread:$0]  %s33, 8192, %s35, [#allocation6], 512, 512, 32
    $region9: #{tpu_custom_call.1} parent=1 // pred_fallthru
      _
    // Predicated region
    $region10: #{tpu_custom_call.1} parent=1 // pred_check
      _
    $region11: #{tpu_custom_call.1} parent=1 // pred_check_branch
      %42 = sbr.rel (0) target = $region13
    $region12: #{tpu_custom_call.1} parent=1 // pred_region
      %44 = vsyncadd [#allocation6], 0
      %s46 = sshll.u32 %s2, 4
      %s47 = int_to_ptr.hbm [resolvable:$true] %s46
      %s48 = sshll.u32 [#allocation7], 4
      %s49 = int_to_ptr.vmem [resolvable:$true] %s48
      %51 = dma.hbm_to_vmem [thread:$0]  %s47, 64, %s49, [#allocation6]
    $region13: #{tpu_custom_call.1} parent=1 // pred_fallthru
      _
    // Predicated region
    $region14: #{tpu_custom_call.1} parent=1 // pred_check
      _
    $region15: #{tpu_custom_call.1} parent=1 // pred_check_branch
      %53 = sbr.rel (0) target = $region17
    $region16: #{tpu_custom_call.1} parent=1 // pred_region
      %55 = vsyncadd [#allocation9], 0
      %s56 = sshll.u32 %s3, 4
      %s57 = int_to_ptr.hbm [resolvable:$true] %s56
      %s58 = sshll.u32 [#allocation8], 4
      %s59 = int_to_ptr.vmem [resolvable:$true] %s58
      %64 = dma.hbm_to_vmem [thread:$0]  %s57, 4096, %s59, [#allocation9], 128, 128, 8
    $region17: #{tpu_custom_call.1} parent=1 // pred_fallthru
      _
    // Predicated region
    $region18: #{tpu_custom_call.1} parent=1 // pred_check
      _
    $region19: #{tpu_custom_call.1} parent=1 // pred_check_branch
      %66 = sbr.rel (0) target = $region21
    $region20: #{tpu_custom_call.1} parent=1 // pred_region
      %68 = vsyncadd [#allocation9], 0
      %s69 = sshll.u32 %s4, 4
      %s70 = int_to_ptr.hbm [resolvable:$true] %s69
      %s71 = sshll.u32 [#allocation10], 4
      %s72 = int_to_ptr.vmem [resolvable:$true] %s71
      %77 = dma.hbm_to_vmem [thread:$0]  %s70, 4096, %s72, [#allocation9], 128, 128, 8
    $region21: #{tpu_custom_call.1} parent=1 // pred_fallthru
      _
    // Predicated region
    $region22: #{tpu_custom_call.1} parent=1 // pred_check
      _
    $region23: #{tpu_custom_call.1} parent=1 // pred_check_branch
      %79 = sbr.rel (0) target = $region25
    $region24: #{tpu_custom_call.1} parent=1 // pred_region
      _
    $region25: #{tpu_custom_call.1} parent=1 // pred_fallthru
      _
    // Predicated region
    $region26: #{tpu_custom_call.1} parent=1 // pred_check
      _
    $region27: #{tpu_custom_call.1} parent=1 // pred_check_branch
      %81 = sbr.rel (0) target = $region29
    $region28: #{tpu_custom_call.1} parent=1 // pred_region
      %83 = dma.done [#allocation3], 256
    $region29: #{tpu_custom_call.1} parent=1 // pred_fallthru
      _
    // Predicated region
    $region30: #{tpu_custom_call.1} parent=1 // pred_check
      _
    $region31: #{tpu_custom_call.1} parent=1 // pred_check_branch
      %85 = sbr.rel (0) target = $region33
    $region32: #{tpu_custom_call.1} parent=1 // pred_region
      %87 = dma.done [#allocation6], 8192
    $region33: #{tpu_custom_call.1} parent=1 // pred_fallthru
      _
    // Predicated region
    $region34: #{tpu_custom_call.1} parent=1 // pred_check
      _
    $region35: #{tpu_custom_call.1} parent=1 // pred_check_branch
      %89 = sbr.rel (0) target = $region37
    $region36: #{tpu_custom_call.1} parent=1 // pred_region
      %91 = dma.done [#allocation6], 64
    $region37: #{tpu_custom_call.1} parent=1 // pred_fallthru
      _
    // Predicated region
    $region38: #{tpu_custom_call.1} parent=1 // pred_check
      _
    $region39: #{tpu_custom_call.1} parent=1 // pred_check_branch
      %93 = sbr.rel (0) target = $region41
    $region40: #{tpu_custom_call.1} parent=1 // pred_region
      %95 = dma.done [#allocation9], 4096
    $region41: #{tpu_custom_call.1} parent=1 // pred_fallthru
      _
    // Predicated region
    $region42: #{tpu_custom_call.1} parent=1 // pred_check
      _
    $region43: #{tpu_custom_call.1} parent=1 // pred_check_branch
      %97 = sbr.rel (0) target = $region45
    $region44: #{tpu_custom_call.1} parent=1 // pred_region
      %99 = dma.done [#allocation9], 4096
    $region45: #{tpu_custom_call.1} parent=1 // pred_fallthru
      _
    %v100 = vld [vmem:[#allocation2] sm:$0xff]
    %v101 = vld [vmem:[#allocation2 + $0x8] sm:$0xff]
    %v102 = vld [vmem:[#allocation5] sm:$0xff]
    %v103 = vld [vmem:[#allocation5 + $0x8] sm:$0xff]
    %v104 = vld [vmem:[#allocation5 + $0x10] sm:$0xff]
    %v105 = vld [vmem:[#allocation5 + $0x18] sm:$0xff]
    %v106 = vld [vmem:[#allocation5 + $0x20] sm:$0xff]
    %v107 = vld [vmem:[#allocation5 + $0x28] sm:$0xff]
    %v108 = vld [vmem:[#allocation5 + $0x30] sm:$0xff]
    %v109 = vld [vmem:[#allocation5 + $0x38] sm:$0xff]
    %v110 = vld [vmem:[#allocation5 + $0x40] sm:$0xff]
    %v111 = vld [vmem:[#allocation5 + $0x48] sm:$0xff]
    %v112 = vld [vmem:[#allocation5 + $0x50] sm:$0xff]
    %v113 = vld [vmem:[#allocation5 + $0x58] sm:$0xff]
    %v114 = vld [vmem:[#allocation5 + $0x60] sm:$0xff]
    %v115 = vld [vmem:[#allocation5 + $0x68] sm:$0xff]
    %v116 = vld [vmem:[#allocation5 + $0x70] sm:$0xff]
    %v117 = vld [vmem:[#allocation5 + $0x78] sm:$0xff]
    %v118 = vld [vmem:[#allocation5 + $0x80] sm:$0xff]
    %v119 = vld [vmem:[#allocation5 + $0x88] sm:$0xff]
    %v120 = vld [vmem:[#allocation5 + $0x90] sm:$0xff]
    %v121 = vld [vmem:[#allocation5 + $0x98] sm:$0xff]
    %v122 = vld [vmem:[#allocation5 + $0xa0] sm:$0xff]
    %v123 = vld [vmem:[#allocation5 + $0xa8] sm:$0xff]
    %v124 = vld [vmem:[#allocation5 + $0xb0] sm:$0xff]
    %v125 = vld [vmem:[#allocation5 + $0xb8] sm:$0xff]
    %v126 = vld [vmem:[#allocation5 + $0xc0] sm:$0xff]
    %v127 = vld [vmem:[#allocation5 + $0xc8] sm:$0xff]
    %v128 = vld [vmem:[#allocation5 + $0xd0] sm:$0xff]
    %v129 = vld [vmem:[#allocation5 + $0xd8] sm:$0xff]
    %v130 = vld [vmem:[#allocation5 + $0xe0] sm:$0xff]
    %v131 = vld [vmem:[#allocation5 + $0xe8] sm:$0xff]
    %v132 = vld [vmem:[#allocation5 + $0xf0] sm:$0xff]
    %v133 = vld [vmem:[#allocation5 + $0xf8] sm:$0xff]
    %v134 = vld [vmem:[#allocation5 + $0x100] sm:$0xff]
    %v135 = vld [vmem:[#allocation5 + $0x108] sm:$0xff]
    %v136 = vld [vmem:[#allocation5 + $0x110] sm:$0xff]
    %v137 = vld [vmem:[#allocation5 + $0x118] sm:$0xff]
    %v138 = vld [vmem:[#allocation5 + $0x120] sm:$0xff]
    %v139 = vld [vmem:[#allocation5 + $0x128] sm:$0xff]
    %v140 = vld [vmem:[#allocation5 + $0x130] sm:$0xff]
    %v141 = vld [vmem:[#allocation5 + $0x138] sm:$0xff]
    %v142 = vld [vmem:[#allocation5 + $0x140] sm:$0xff]
    %v143 = vld [vmem:[#allocation5 + $0x148] sm:$0xff]
    %v144 = vld [vmem:[#allocation5 + $0x150] sm:$0xff]
    %v145 = vld [vmem:[#allocation5 + $0x158] sm:$0xff]
    %v146 = vld [vmem:[#allocation5 + $0x160] sm:$0xff]
    %v147 = vld [vmem:[#allocation5 + $0x168] sm:$0xff]
    %v148 = vld [vmem:[#allocation5 + $0x170] sm:$0xff]
    %v149 = vld [vmem:[#allocation5 + $0x178] sm:$0xff]
    %v150 = vld [vmem:[#allocation5 + $0x180] sm:$0xff]
    %v151 = vld [vmem:[#allocation5 + $0x188] sm:$0xff]
    %v152 = vld [vmem:[#allocation5 + $0x190] sm:$0xff]
    %v153 = vld [vmem:[#allocation5 + $0x198] sm:$0xff]
    %v154 = vld [vmem:[#allocation5 + $0x1a0] sm:$0xff]
    %v155 = vld [vmem:[#allocation5 + $0x1a8] sm:$0xff]
    %v156 = vld [vmem:[#allocation5 + $0x1b0] sm:$0xff]
    %v157 = vld [vmem:[#allocation5 + $0x1b8] sm:$0xff]
    %v158 = vld [vmem:[#allocation5 + $0x1c0] sm:$0xff]
    %v159 = vld [vmem:[#allocation5 + $0x1c8] sm:$0xff]
    %v160 = vld [vmem:[#allocation5 + $0x1d0] sm:$0xff]
    %v161 = vld [vmem:[#allocation5 + $0x1d8] sm:$0xff]
    %v162 = vld [vmem:[#allocation5 + $0x1e0] sm:$0xff]
    %v163 = vld [vmem:[#allocation5 + $0x1e8] sm:$0xff]
    %v164 = vld [vmem:[#allocation5 + $0x1f0] sm:$0xff]
    %v165 = vld [vmem:[#allocation5 + $0x1f8] sm:$0xff]
    %v166 = vld [vmem:[#allocation7] sm:$0xf]
    %v168 = vperm.slane %v166, 0
    %v169 = vperm.slane %v166, 1
    %v170 = vperm.slane %v166, 2
    %v171 = vperm.slane %v166, 3
    %176 = vmatpush.msra.mxu0 %v162
    %177 = vmatpush.msra.mxu0 %v158
    %178 = vmatpush.msra.mxu0 %v154
    %179 = vmatpush.msra.mxu0 %v150
    %180 = vmatpush.msra.mxu0 %v146
    %181 = vmatpush.msra.mxu0 %v142
    %182 = vmatpush.msra.mxu0 %v138
    %183 = vmatpush.msra.mxu0 %v134
    %184 = vmatpush.msra.mxu0 %v130
    %185 = vmatpush.msra.mxu0 %v126
    %186 = vmatpush.msra.mxu0 %v122
    %187 = vmatpush.msra.mxu0 %v118
    %188 = vmatpush.msra.mxu0 %v114
    %189 = vmatpush.msra.mxu0 %v110
    %190 = vmatpush.msra.mxu0 %v106
    %191 = vmatpush.msra.mxu0 %v102
    %192 = vmatmul.f32.gmra.mxu0 %v100
    %v193 = vpop.f32.mrf.mxu0
    %v194 = vadd.f32 %v168, %v193
    %195 = vmatmul.f32.gmra.mxu0 %v101
    %v196 = vpop.f32.mrf.mxu0
    %v197 = vadd.f32 %v168, %v196
    %198 = vdwg.mxu0
    %199 = vmatpush.msra.mxu0 %v163
    %200 = vmatpush.msra.mxu0 %v159
    %201 = vmatpush.msra.mxu0 %v155
    %202 = vmatpush.msra.mxu0 %v151
    %203 = vmatpush.msra.mxu0 %v147
    %204 = vmatpush.msra.mxu0 %v143
    %205 = vmatpush.msra.mxu0 %v139
    %206 = vmatpush.msra.mxu0 %v135
    %207 = vmatpush.msra.mxu0 %v131
    %208 = vmatpush.msra.mxu0 %v127
    %209 = vmatpush.msra.mxu0 %v123
    %210 = vmatpush.msra.mxu0 %v119
    %211 = vmatpush.msra.mxu0 %v115
    %212 = vmatpush.msra.mxu0 %v111
    %213 = vmatpush.msra.mxu0 %v107
    %214 = vmatpush.msra.mxu0 %v103
    %215 = vmatmul.f32.gmra.mxu0 %v100
    %v216 = vpop.f32.mrf.mxu0
    %v217 = vadd.f32 %v169, %v216
    %218 = vmatmul.f32.gmra.mxu0 %v101
    %v219 = vpop.f32.mrf.mxu0
    %v220 = vadd.f32 %v169, %v219
    %221 = vdwg.mxu0
    %222 = vmatpush.msra.mxu0 %v164
    %223 = vmatpush.msra.mxu0 %v160
    %224 = vmatpush.msra.mxu0 %v156
    %225 = vmatpush.msra.mxu0 %v152
    %226 = vmatpush.msra.mxu0 %v148
    %227 = vmatpush.msra.mxu0 %v144
    %228 = vmatpush.msra.mxu0 %v140
    %229 = vmatpush.msra.mxu0 %v136
    %230 = vmatpush.msra.mxu0 %v132
    %231 = vmatpush.msra.mxu0 %v128
    %232 = vmatpush.msra.mxu0 %v124
    %233 = vmatpush.msra.mxu0 %v120
    %234 = vmatpush.msra.mxu0 %v116
    %235 = vmatpush.msra.mxu0 %v112
    %236 = vmatpush.msra.mxu0 %v108
    %237 = vmatpush.msra.mxu0 %v104
    %238 = vmatmul.f32.gmra.mxu0 %v100
    %v239 = vpop.f32.mrf.mxu0
    %v240 = vadd.f32 %v170, %v239
    %241 = vmatmul.f32.gmra.mxu0 %v101
    %v242 = vpop.f32.mrf.mxu0
    %v243 = vadd.f32 %v170, %v242
    %244 = vdwg.mxu0
    %245 = vmatpush.msra.mxu0 %v165
    %246 = vmatpush.msra.mxu0 %v161
    %247 = vmatpush.msra.mxu0 %v157
    %248 = vmatpush.msra.mxu0 %v153
    %249 = vmatpush.msra.mxu0 %v149
    %250 = vmatpush.msra.mxu0 %v145
    %251 = vmatpush.msra.mxu0 %v141
    %252 = vmatpush.msra.mxu0 %v137
    %253 = vmatpush.msra.mxu0 %v133
    %254 = vmatpush.msra.mxu0 %v129
    %255 = vmatpush.msra.mxu0 %v125
    %256 = vmatpush.msra.mxu0 %v121
    %257 = vmatpush.msra.mxu0 %v117
    %258 = vmatpush.msra.mxu0 %v113
    %259 = vmatpush.msra.mxu0 %v109
    %260 = vmatpush.msra.mxu0 %v105
    %261 = vmatmul.f32.gmra.mxu0 %v100
    %v262 = vpop.f32.mrf.mxu0
    %v263 = vadd.f32 %v171, %v262
    %264 = vmatmul.f32.gmra.mxu0 %v101
    %v265 = vpop.f32.mrf.mxu0
    %v266 = vadd.f32 %v171, %v265
    %267 = vdwg.mxu0
    %v268 = vxor.u32 %v194, 2147483648
    %v269 = vxor.u32 %v217, 2147483648
    %v270 = vxor.u32 %v197, 2147483648
    %v271 = vxor.u32 %v220, 2147483648
    %v272 = vmul.f32 %v268, 1.442695
    %v273 = vpow.pop %v272
    %v274 = vmul.f32 %v269, 1.442695
    %v275 = vpow.pop %v274
    %v276 = vmul.f32 %v270, 1.442695
    %v277 = vpow.pop %v276
    %v278 = vmul.f32 %v271, 1.442695
    %v279 = vpow.pop %v278
    %v280 = vadd.f32 %v273, 1.0
    %v281 = vadd.f32 %v275, 1.0
    %v282 = vadd.f32 %v277, 1.0
    %v283 = vadd.f32 %v279, 1.0
    %v284 = vrcp.pop %v280
    %v285 = vmul.f32 %v280, %v284
    %v286 = vsub.f32 1.0, %v285
    %v287 = vmul.f32 %v284, %v286
    %v288 = vadd.f32 %v284, %v287
    %vm289 = vweird.f32 %v280
    %vm290 = vweird.f32 %v284
    %vm291 = vmor %vm289, %vm290
    %v292 = vsel %vm291, %v284, %v288
    %v293 = vand.u32 2147483647, %v280
    %vm294 = vcmp.eq.f32.partialorder %v293, 8.507059e+37
    %v295 = vand.u32 %v280, 2147483648
    %v296 = vor.u32 1.1754944e-38, %v295
    %v297 = vsel %vm294, %v296, %v292
    %v298 = vmul.f32 1.0, %v297
    %v299 = vrcp.pop %v281
    %v300 = vmul.f32 %v281, %v299
    %v301 = vsub.f32 1.0, %v300
    %v302 = vmul.f32 %v299, %v301
    %v303 = vadd.f32 %v299, %v302
    %vm304 = vweird.f32 %v281
    %vm305 = vweird.f32 %v299
    %vm306 = vmor %vm304, %vm305
    %v307 = vsel %vm306, %v299, %v303
    %v308 = vand.u32 2147483647, %v281
    %vm309 = vcmp.eq.f32.partialorder %v308, 8.507059e+37
    %v310 = vand.u32 %v281, 2147483648
    %v311 = vor.u32 1.1754944e-38, %v310
    %v312 = vsel %vm309, %v311, %v307
    %v313 = vmul.f32 1.0, %v312
    %v314 = vrcp.pop %v282
    %v315 = vmul.f32 %v282, %v314
    %v316 = vsub.f32 1.0, %v315
    %v317 = vmul.f32 %v314, %v316
    %v318 = vadd.f32 %v314, %v317
    %vm319 = vweird.f32 %v282
    %vm320 = vweird.f32 %v314
    %vm321 = vmor %vm319, %vm320
    %v322 = vsel %vm321, %v314, %v318
    %v323 = vand.u32 2147483647, %v282
    %vm324 = vcmp.eq.f32.partialorder %v323, 8.507059e+37
    %v325 = vand.u32 %v282, 2147483648
    %v326 = vor.u32 1.1754944e-38, %v325
    %v327 = vsel %vm324, %v326, %v322
    %v328 = vmul.f32 1.0, %v327
    %v329 = vrcp.pop %v283
    %v330 = vmul.f32 %v283, %v329
    %v331 = vsub.f32 1.0, %v330
    %v332 = vmul.f32 %v329, %v331
    %v333 = vadd.f32 %v329, %v332
    %vm334 = vweird.f32 %v283
    %vm335 = vweird.f32 %v329
    %vm336 = vmor %vm334, %vm335
    %v337 = vsel %vm336, %v329, %v333
    %v338 = vand.u32 2147483647, %v283
    %vm339 = vcmp.eq.f32.partialorder %v338, 8.507059e+37
    %v340 = vand.u32 %v283, 2147483648
    %v341 = vor.u32 1.1754944e-38, %v340
    %v342 = vsel %vm339, %v341, %v337
    %v343 = vmul.f32 1.0, %v342
    %v344 = vmul.f32 %v194, %v298
    %v345 = vmul.f32 %v217, %v313
    %v346 = vmul.f32 %v197, %v328
    %v347 = vmul.f32 %v220, %v343
    %v348 = vmul.f32 %v344, %v240
    %v349 = vmul.f32 %v345, %v263
    %v350 = vmul.f32 %v346, %v243
    %v351 = vmul.f32 %v347, %v266
    %v352 = vmul.f32 %v348, %v348
    %v353 = vmul.f32 %v349, %v349
    %v354 = vmul.f32 %v350, %v350
    %v355 = vmul.f32 %v351, %v351
    %v356 = vld [vmem:[#allocation8] sm:$0xff]
    %v357 = vld [vmem:[#allocation8 + $0x8] sm:$0xff]
    %v358 = vld [vmem:[#allocation8 + $0x10] sm:$0xff]
    %v359 = vld [vmem:[#allocation8 + $0x18] sm:$0xff]
    %v360 = vld [vmem:[#allocation8 + $0x20] sm:$0xff]
    %v361 = vld [vmem:[#allocation8 + $0x28] sm:$0xff]
    %v362 = vld [vmem:[#allocation8 + $0x30] sm:$0xff]
    %v363 = vld [vmem:[#allocation8 + $0x38] sm:$0xff]
    %v364 = vld [vmem:[#allocation8 + $0x40] sm:$0xff]
    %v365 = vld [vmem:[#allocation8 + $0x48] sm:$0xff]
    %v366 = vld [vmem:[#allocation8 + $0x50] sm:$0xff]
    %v367 = vld [vmem:[#allocation8 + $0x58] sm:$0xff]
    %v368 = vld [vmem:[#allocation8 + $0x60] sm:$0xff]
    %v369 = vld [vmem:[#allocation8 + $0x68] sm:$0xff]
    %v370 = vld [vmem:[#allocation8 + $0x70] sm:$0xff]
    %v371 = vld [vmem:[#allocation8 + $0x78] sm:$0xff]
    %v372 = vld [vmem:[#allocation8 + $0x80] sm:$0xff]
    %v373 = vld [vmem:[#allocation8 + $0x88] sm:$0xff]
    %v374 = vld [vmem:[#allocation8 + $0x90] sm:$0xff]
    %v375 = vld [vmem:[#allocation8 + $0x98] sm:$0xff]
    %v376 = vld [vmem:[#allocation8 + $0xa0] sm:$0xff]
    %v377 = vld [vmem:[#allocation8 + $0xa8] sm:$0xff]
    %v378 = vld [vmem:[#allocation8 + $0xb0] sm:$0xff]
    %v379 = vld [vmem:[#allocation8 + $0xb8] sm:$0xff]
    %v380 = vld [vmem:[#allocation8 + $0xc0] sm:$0xff]
    %v381 = vld [vmem:[#allocation8 + $0xc8] sm:$0xff]
    %v382 = vld [vmem:[#allocation8 + $0xd0] sm:$0xff]
    %v383 = vld [vmem:[#allocation8 + $0xd8] sm:$0xff]
    %v384 = vld [vmem:[#allocation8 + $0xe0] sm:$0xff]
    %v385 = vld [vmem:[#allocation8 + $0xe8] sm:$0xff]
    %v386 = vld [vmem:[#allocation8 + $0xf0] sm:$0xff]
    %v387 = vld [vmem:[#allocation8 + $0xf8] sm:$0xff]
    %v388 = vld [vmem:[#allocation10] sm:$0xff]
    %v389 = vld [vmem:[#allocation10 + $0x8] sm:$0xff]
    %v390 = vld [vmem:[#allocation10 + $0x10] sm:$0xff]
    %v391 = vld [vmem:[#allocation10 + $0x18] sm:$0xff]
    %v392 = vld [vmem:[#allocation10 + $0x20] sm:$0xff]
    %v393 = vld [vmem:[#allocation10 + $0x28] sm:$0xff]
    %v394 = vld [vmem:[#allocation10 + $0x30] sm:$0xff]
    %v395 = vld [vmem:[#allocation10 + $0x38] sm:$0xff]
    %v396 = vld [vmem:[#allocation10 + $0x40] sm:$0xff]
    %v397 = vld [vmem:[#allocation10 + $0x48] sm:$0xff]
    %v398 = vld [vmem:[#allocation10 + $0x50] sm:$0xff]
    %v399 = vld [vmem:[#allocation10 + $0x58] sm:$0xff]
    %v400 = vld [vmem:[#allocation10 + $0x60] sm:$0xff]
    %v401 = vld [vmem:[#allocation10 + $0x68] sm:$0xff]
    %v402 = vld [vmem:[#allocation10 + $0x70] sm:$0xff]
    %v403 = vld [vmem:[#allocation10 + $0x78] sm:$0xff]
    %v404 = vld [vmem:[#allocation10 + $0x80] sm:$0xff]
    %v405 = vld [vmem:[#allocation10 + $0x88] sm:$0xff]
    %v406 = vld [vmem:[#allocation10 + $0x90] sm:$0xff]
    %v407 = vld [vmem:[#allocation10 + $0x98] sm:$0xff]
    %v408 = vld [vmem:[#allocation10 + $0xa0] sm:$0xff]
    %v409 = vld [vmem:[#allocation10 + $0xa8] sm:$0xff]
    %v410 = vld [vmem:[#allocation10 + $0xb0] sm:$0xff]
    %v411 = vld [vmem:[#allocation10 + $0xb8] sm:$0xff]
    %v412 = vld [vmem:[#allocation10 + $0xc0] sm:$0xff]
    %v413 = vld [vmem:[#allocation10 + $0xc8] sm:$0xff]
    %v414 = vld [vmem:[#allocation10 + $0xd0] sm:$0xff]
    %v415 = vld [vmem:[#allocation10 + $0xd8] sm:$0xff]
    %v416 = vld [vmem:[#allocation10 + $0xe0] sm:$0xff]
    %v417 = vld [vmem:[#allocation10 + $0xe8] sm:$0xff]
    %v418 = vld [vmem:[#allocation10 + $0xf0] sm:$0xff]
    %v419 = vld [vmem:[#allocation10 + $0xf8] sm:$0xff]
    %420 = vmatpush.msra.mxu0 %v403
    %421 = vmatpush.msra.mxu0 %v402
    %422 = vmatpush.msra.mxu0 %v401
    %423 = vmatpush.msra.mxu0 %v400
    %424 = vmatpush.msra.mxu0 %v399
    %425 = vmatpush.msra.mxu0 %v398
    %426 = vmatpush.msra.mxu0 %v397
    %427 = vmatpush.msra.mxu0 %v396
    %428 = vmatpush.msra.mxu0 %v395
    %429 = vmatpush.msra.mxu0 %v394
    %430 = vmatpush.msra.mxu0 %v393
    %431 = vmatpush.msra.mxu0 %v392
    %432 = vmatpush.msra.mxu0 %v391
    %433 = vmatpush.msra.mxu0 %v390
    %434 = vmatpush.msra.mxu0 %v389
    %435 = vmatpush.msra.mxu0 %v388
    %436 = vmatmul.f32.gmra.mxu0 %v348
    %v437 = vpop.f32.mrf.mxu0
    %v438 = vadd.f32 0.0, %v437
    %439 = vmatmul.f32.gmra.mxu0 %v350
    %v440 = vpop.f32.mrf.mxu0
    %v441 = vadd.f32 0.0, %v440
    %442 = vdwg.mxu0
    %443 = vmatpush.msra.mxu0 %v419
    %444 = vmatpush.msra.mxu0 %v418
    %445 = vmatpush.msra.mxu0 %v417
    %446 = vmatpush.msra.mxu0 %v416
    %447 = vmatpush.msra.mxu0 %v415
    %448 = vmatpush.msra.mxu0 %v414
    %449 = vmatpush.msra.mxu0 %v413
    %450 = vmatpush.msra.mxu0 %v412
    %451 = vmatpush.msra.mxu0 %v411
    %452 = vmatpush.msra.mxu0 %v410
    %453 = vmatpush.msra.mxu0 %v409
    %454 = vmatpush.msra.mxu0 %v408
    %455 = vmatpush.msra.mxu0 %v407
    %456 = vmatpush.msra.mxu0 %v406
    %457 = vmatpush.msra.mxu0 %v405
    %458 = vmatpush.msra.mxu0 %v404
    %459 = vmatmul.f32.gmra.mxu0 %v349
    %v460 = vpop.f32.mrf.mxu0
    %v461 = vadd.f32 %v438, %v460
    %462 = vmatmul.f32.gmra.mxu0 %v351
    %v463 = vpop.f32.mrf.mxu0
    %v464 = vadd.f32 %v441, %v463
    %465 = vdwg.mxu0
    %466 = vmatpush.msra.mxu0 %v371
    %467 = vmatpush.msra.mxu0 %v370
    %468 = vmatpush.msra.mxu0 %v369
    %469 = vmatpush.msra.mxu0 %v368
    %470 = vmatpush.msra.mxu0 %v367
    %471 = vmatpush.msra.mxu0 %v366
    %472 = vmatpush.msra.mxu0 %v365
    %473 = vmatpush.msra.mxu0 %v364
    %474 = vmatpush.msra.mxu0 %v363
    %475 = vmatpush.msra.mxu0 %v362
    %476 = vmatpush.msra.mxu0 %v361
    %477 = vmatpush.msra.mxu0 %v360
    %478 = vmatpush.msra.mxu0 %v359
    %479 = vmatpush.msra.mxu0 %v358
    %480 = vmatpush.msra.mxu0 %v357
    %481 = vmatpush.msra.mxu0 %v356
    %482 = vmatmul.f32.gmra.mxu0 %v352
    %v483 = vpop.f32.mrf.mxu0
    %v484 = vadd.f32 1e-08, %v483
    %485 = vmatmul.f32.gmra.mxu0 %v354
    %v486 = vpop.f32.mrf.mxu0
    %v487 = vadd.f32 1e-08, %v486
    %488 = vdwg.mxu0
    %489 = vmatpush.msra.mxu0 %v387
    %490 = vmatpush.msra.mxu0 %v386
    %491 = vmatpush.msra.mxu0 %v385
    %492 = vmatpush.msra.mxu0 %v384
    %493 = vmatpush.msra.mxu0 %v383
    %494 = vmatpush.msra.mxu0 %v382
    %495 = vmatpush.msra.mxu0 %v381
    %496 = vmatpush.msra.mxu0 %v380
    %497 = vmatpush.msra.mxu0 %v379
    %498 = vmatpush.msra.mxu0 %v378
    %499 = vmatpush.msra.mxu0 %v377
    %500 = vmatpush.msra.mxu0 %v376
    %501 = vmatpush.msra.mxu0 %v375
    %502 = vmatpush.msra.mxu0 %v374
    %503 = vmatpush.msra.mxu0 %v373
    %504 = vmatpush.msra.mxu0 %v372
    %505 = vmatmul.f32.gmra.mxu0 %v353
    %v506 = vpop.f32.mrf.mxu0
    %v507 = vadd.f32 %v484, %v506
    %508 = vmatmul.f32.gmra.mxu0 %v355
    %v509 = vpop.f32.mrf.mxu0
    %v510 = vadd.f32 %v487, %v509
    %511 = vdwg.mxu0
    %v512 = vrsqrt.pop %v507
    %v513 = vmul.f32 %v512, %v507
    %v514 = vmul.f32 %v513, %v512
    %v515 = vmul.f32 0.5, %v514
    %v516 = vsub.f32 1.5, %v515
    %v517 = vmul.f32 %v512, %v516
    %vm518 = vweird.f32 %v507
    %vm519 = vweird.f32 %v512
    %vm520 = vmor %vm518, %vm519
    %v521 = vsel %vm520, %v512, %v517
    %v522 = vrsqrt.pop %v510
    %v523 = vmul.f32 %v522, %v510
    %v524 = vmul.f32 %v523, %v522
    %v525 = vmul.f32 0.5, %v524
    %v526 = vsub.f32 1.5, %v525
    %v527 = vmul.f32 %v522, %v526
    %vm528 = vweird.f32 %v510
    %vm529 = vweird.f32 %v522
    %vm530 = vmor %vm528, %vm529
    %v531 = vsel %vm530, %v522, %v527
    %v532 = vmul.f32 %v461, %v521
    %v533 = vmul.f32 %v464, %v531
    %v534 = vld [vmem:[%s5] sm:$0x1]
    %v536 = vperm.slane %v534, 0
    %v538 = vadd.f32 %v532, %v536
    %v539 = vadd.f32 %v533, %v536
    %540 = vst [vmem:[#allocation11] sm:$0xff] %v538
    %541 = vst [vmem:[#allocation11 + $0x8] sm:$0xff] %v539
    // Predicated region
    $region46: #{tpu_custom_call.1} parent=1 // pred_check
      _
    $region47: #{tpu_custom_call.1} parent=1 // pred_check_branch
      %543 = sbr.rel (0) target = $region49
    $region48: #{tpu_custom_call.1} parent=1 // pred_region
      %545 = vsyncadd [#allocation4], 192
      %s546 = sshll.u32 [#allocation11], 4
      %s547 = int_to_ptr.vmem [resolvable:$true] %s546
      %s548 = sshll.u32 %s6, 4
      %s549 = int_to_ptr.hbm [resolvable:$true] %s548
      %554 = dma.vmem_to_hbm [thread:$0]  %s547, 64, %s549, [#allocation4], 64, 64, 4
    $region49: #{tpu_custom_call.1} parent=1 // pred_fallthru
      _
    // Predicated region
    $region50: #{tpu_custom_call.1} parent=1 // pred_check
      _
    $region51: #{tpu_custom_call.1} parent=1 // pred_check_branch
      %556 = sbr.rel (0) target = $region53
    $region52: #{tpu_custom_call.1} parent=1 // pred_region
      %558 = dma.done [#allocation4], 256
    $region53: #{tpu_custom_call.1} parent=1 // pred_fallthru
      _
    %559 = vsyncpa [#allocation3], 1
    %560 = vsyncpa [#allocation6], 1
    %561 = vsyncpa [#allocation9], 1
    %562 = vsyncpa [#allocation4], 1

</llo_original>
